<compile_context>
chip_gen: v6e
topology: v6e:2x2x1
jax: 0.10.0
libtpu: 0.0.40
codegen_flags: <defaults>
</compile_context>

<pallas_src>
import math
import numpy as np
import jax
import jax.numpy as jnp
from jax.experimental import pallas as pl
from jax.experimental.pallas import tpu as pltpu


# ---------------------------------------------------------------------------
# Deterministic stand-in for filters.raised_cosine_pillow_08 (fixed buffer,
# not a learnable parameter).  Returns [n_basis, tau], like the original.
# TODO(synk): exact coefficients of the original pillow-08 basis are not
# reproduced; this is a deterministic raised-cosine basis with the same shape.
# ---------------------------------------------------------------------------
def raised_cosine_pillow_08(tau, n_basis, mu):
    t = np.arange(1, tau + 1, dtype=np.float64)
    a = np.log(t + 1.0)
    if n_basis > 1:
        centers = np.linspace(a.min(), a.max(), n_basis)
        spread = (a.max() - a.min()) / (n_basis - 1) + mu
    else:
        centers = np.array([a.min()])
        spread = (a.max() - a.min()) + mu
    arg = np.clip((a[None, :] - centers[:, None]) * np.pi / spread, -np.pi, np.pi)
    basis = 0.5 * (1.0 + np.cos(arg))
    return basis.astype(np.float32)          # [n_basis, tau]


# ---------------------------------------------------------------------------
# Pallas kernel: fused potential matmul + sigmoid + Bernoulli spikes.
# ---------------------------------------------------------------------------
def snn_forward_kernel(z_ref,      # VMEM [B, K]        f32  (flattened x | hist)
                       w_ref,      # VMEM [K, n_out]    f32  (fused filters+weights)
                       b_ref,      # VMEM [1, n_out]    f32  (feedback bias)
                       u_ref,      # VMEM [B, n_out]    f32  uniforms in [0,1)
                       out_ref):   # out  [B, 2*n_out]  f32  [sig | spikes]
    # Single MXU matmul covers the feedforward filter bank, the feedforward
    # synapses and the feedback synapse at once.
    potential = jnp.dot(z_ref[...], w_ref[...],
                        preferred_element_type=jnp.float32) + b_ref[...]
    sig = jax.nn.sigmoid(potential)
    spk = (u_ref[...] < sig).astype(jnp.float32)      # Bernoulli(sigmoid(pot))
    out_ref[...] = jnp.concatenate([sig, spk], axis=-1)


# ---------------------------------------------------------------------------
# Wrapper: weight fusion (done once per call on tiny tensors), kernel call,
# spiking-history update (pure data shuffling -> plain JAX glue).
# ---------------------------------------------------------------------------
def snn_layer_forward(input_history, spiking_history, params, rng_key):
    B, n_in, T = input_history.shape
    n_out = params["fb_w"].shape[0]
    Th = spiking_history.shape[-1]
    tau_ff = params["ff_filter"].shape[0]
    tau_fb = params["fb_filter"].shape[0]
    memory_length = max(tau_ff, tau_fb)

    # flip(x, -1) @ f[:T]  ==  x @ flip(f[:T])  -> fold flip into the filter.
    ff_filt_flip = params["ff_filter"][:T][::-1, :]          # [T, n_basis]
    fb_filt_flip = params["fb_filter"][:Th][::-1]            # [Th]

    # Fused feedforward weight: W_ff[(j,t), o] = sum_k flip(f)[t,k] * ff_w[k,o,j]
    W_ff = jnp.einsum("tk,koj->jto", ff_filt_flip,
                      params["ff_w"]).reshape(n_in * T, n_out)
    # Fused feedback weight:   W_fb[(j,t), o] = flip(fb)[t] * fb_w[o,j]
    W_fb = jnp.einsum("t,oj->jto", fb_filt_flip,
                      params["fb_w"]).reshape(n_out * Th, n_out)
    W_full = jnp.concatenate([W_ff, W_fb], axis=0).astype(jnp.float32)  # [K, n_out]

    # Lane-dense kernel input: [B, n_in*T + n_out*Th].
    z = jnp.concatenate(
        [input_history.reshape(B, n_in * T),
         spiking_history.reshape(B, n_out * Th)], axis=-1).astype(jnp.float32)

    bias = params["fb_b"].reshape(1, n_out).astype(jnp.float32)
    u = jax.random.uniform(rng_key, (B, n_out), jnp.float32)

    out = pl.pallas_call(
        snn_forward_kernel,
        out_shape=jax.ShapeDtypeStruct((B, 2 * n_out), jnp.float32),
        in_specs=[pl.BlockSpec(memory_space=pltpu.MemorySpace.VMEM)] * 4,
        out_specs=pl.BlockSpec(memory_space=pltpu.MemorySpace.VMEM),
    )(z, W_full, bias, u)

    sig = out[:, :n_out]
    spikes = out[:, n_out:]

    # update_spiking_history (matches the PyTorch module exactly).
    new_hist = jnp.concatenate(
        [spiking_history[:, :, 1 - memory_length:],
         jnp.zeros((B, n_out, 1), spiking_history.dtype)], axis=-1)
    new_hist = new_hist.at[:, :, -1].set(spikes)

    # forward returns (sigmoid(potential), spiking_history[:, :, -1])
    return (sig, new_hist[:, :, -1]), new_hist


if __name__ == "__main__":
    key = jax.random.PRNGKey(0)
    B, n_in, n_out = 4, 32, 16
    tau_ff, tau_fb = 8, 2
    n_basis_ff = 2
    mu = 0.5
    T = tau_ff

    # Fixed synaptic filter buffers (module __init__ semantics).
    ff_filter = jnp.asarray(raised_cosine_pillow_08(tau_ff, n_basis_ff, mu)).T  # [tau_ff, n_basis]
    fb_filter = jnp.asarray(raised_cosine_pillow_08(tau_fb, 1, mu))[0]          # [tau_fb]

    # Deterministic synthetic weights (torch.nn.Linear-style uniform ranges).
    k1, k2, k3, k4, k5 = jax.random.split(key, 5)
    b_ff = 1.0 / math.sqrt(n_in)
    b_fb = 1.0 / math.sqrt(n_out)
    params = dict(
        ff_filter=ff_filter,
        fb_filter=fb_filter,
        ff_w=jax.random.uniform(k1, (n_basis_ff, n_out, n_in), jnp.float32, -b_ff, b_ff),
        fb_w=jax.random.uniform(k2, (n_out, n_out), jnp.float32, -b_fb, b_fb),
        fb_b=jax.random.uniform(k3, (n_out,), jnp.float32, -b_fb, b_fb),
    )

    # Inputs: binary spike history [B, n_inputs, T], zero spiking history.
    input_history = (jax.random.uniform(k4, (B, n_in, T)) < 0.3).astype(jnp.float32)
    spiking_history = jnp.zeros((B, n_out, 2), jnp.float32)

    (sig, last_spikes), new_hist = snn_layer_forward(
        input_history, spiking_history, params, rng_key=k5)
    jax.block_until_ready((sig, last_spikes, new_hist))

    assert sig.shape == (B, n_out)
    assert last_spikes.shape == (B, n_out)
    assert new_hist.shape == (B, n_out, 3)          # memory_length=8 grows 2 -> 3
    assert bool(jnp.all((sig > 0) & (sig < 1)))
    assert bool(jnp.all((last_spikes == 0) | (last_spikes == 1)))
    print("KERNEL_OK")
</pallas_src>

<mosaic_0001>
module attributes {stable_mosaic.version = 11 : i64} {
  func.func @snn_forward_kernel(%arg0: memref<4x288xf32, #tpu.memory_space<vmem>>, %arg1: memref<288x16xf32, #tpu.memory_space<vmem>>, %arg2: memref<1x16xf32, #tpu.memory_space<vmem>>, %arg3: memref<4x16xf32, #tpu.memory_space<vmem>>, %arg4: memref<4x32xf32, #tpu.memory_space<vmem>>) attributes {dimension_semantics = [], scalar_prefetch = 0 : i64, scratch_operands = 0 : i64, tpu.core_type = #tpu.core_type<tc>} {
    %c0 = arith.constant 0 : index
    %c0_0 = arith.constant 0 : index
    %0 = vector.load %arg0[%c0, %c0_0] : memref<4x288xf32, #tpu.memory_space<vmem>>, vector<4x288xf32>
    %c0_1 = arith.constant 0 : index
    %c0_2 = arith.constant 0 : index
    %1 = vector.load %arg1[%c0_1, %c0_2] : memref<288x16xf32, #tpu.memory_space<vmem>>, vector<288x16xf32>
    %cst = arith.constant dense<0.000000e+00> : vector<4x16xf32>
    %2 = tpu.matmul %0, %1, %cst {dimension_numbers = #tpu.dot_dimension_numbers<[1], [0], [0], [1], [0, 0, 1, 1], [], []>} : vector<4x288xf32>, vector<288x16xf32>, vector<4x16xf32> -> vector<4x16xf32>
    %c0_3 = arith.constant 0 : index
    %c0_4 = arith.constant 0 : index
    %3 = vector.load %arg2[%c0_3, %c0_4] : memref<1x16xf32, #tpu.memory_space<vmem>>, vector<1x16xf32>
    %4 = vector.broadcast %3 : vector<1x16xf32> to vector<4x16xf32>
    %5 = arith.addf %2, %4 : vector<4x16xf32>
    %6 = arith.negf %5 : vector<4x16xf32>
    %7 = math.exp %6 : vector<4x16xf32>
    %cst_5 = arith.constant 1.000000e+00 : f32
    %8 = vector.broadcast %cst_5 : f32 to vector<4x16xf32>
    %9 = arith.addf %8, %7 : vector<4x16xf32>
    %10 = arith.divf %8, %9 : vector<4x16xf32>
    %c0_6 = arith.constant 0 : index
    %c0_7 = arith.constant 0 : index
    %11 = vector.load %arg3[%c0_6, %c0_7] : memref<4x16xf32, #tpu.memory_space<vmem>>, vector<4x16xf32>
    %12 = arith.cmpf olt, %11, %10 : vector<4x16xf32>
    %13 = arith.extui %12 : vector<4x16xi1> to vector<4x16xi32>
    %14 = arith.sitofp %13 : vector<4x16xi32> to vector<4x16xf32>
    %15 = tpu.concatenate %10, %14 in 1 : vector<4x16xf32>, vector<4x16xf32> -> vector<4x32xf32>
    %c0_8 = arith.constant 0 : index
    %c0_9 = arith.constant 0 : index
    %16 = vector.load %arg4[%c0_8, %c0_9] : memref<4x32xf32, #tpu.memory_space<vmem>>, vector<4x32xf32>
    tpu.vector_store %arg4[%c0_8, %c0_9], %15 {strides = array<i32>} : memref<4x32xf32, #tpu.memory_space<vmem>>, vector<4x32xf32>,
    return
  }
}

</mosaic_0001>

<llo_original>
// kernel: tpu_custom_call.1
$region0: #{tpu_custom_call.1}
  #allocation0 [shape = 'u32[]', space=smem, size = 0x4, offset = 0x4, fixed_abs, tag = 'smem constant byte address 0x4 - core index']
  #allocation1 [shape = 'u32[144,128]{1,0:T(1,128)}', space=vmem, size = 0x12000, scoped, tag = 'internal scratch']
  %s0 = inlined_call_operand.vmem [shape: f32[4,288], index: 0, kind: input, shape index: {}]
  %s1 = inlined_call_operand.vmem [shape: f32[288,16], index: 1, kind: input, shape index: {}]
  %s2 = inlined_call_operand.vmem [shape: f32[1,16], index: 2, kind: input, shape index: {}]
  %s3 = inlined_call_operand.vmem [shape: f32[4,16], index: 3, kind: input, shape index: {}]
  %s4 = inlined_call_operand.hbm [shape: f32[4,32], index: 4, kind: output, shape index: {}]
  %s5 = sld [smem:[#allocation0]]
  $region26: #{tpu_custom_call.1} parent=0
    _
  %s7 = ssub.s32 1, %s5
  %s8 = scalar_select 0, %s7, %s5
  $region1: #{tpu_custom_call.1} parent=0
    #allocation2 [shape = 'u8[2048]{0}', space=vmem, size = 0x800, scoped, tag = 'output window, operand 0, single buffered']
    #allocation3 [shape = 's32[1]{0}', space=sflag, size = 0x4, scoped, tag = 'scoped memory for tpu_custom_call.1']
    %9 = vsyncpa [#allocation3], 0
    // Predicated region
    $region2: #{tpu_custom_call.1} parent=1 // pred_check
      _
    $region3: #{tpu_custom_call.1} parent=1 // pred_check_branch
      %11 = sbr.rel (0) target = $region5
    $region4: #{tpu_custom_call.1} parent=1 // pred_region
      _
    $region5: #{tpu_custom_call.1} parent=1 // pred_fallthru
      _
    // Predicated region
    $region6: #{tpu_custom_call.1} parent=1 // pred_check
      _
    $region7: #{tpu_custom_call.1} parent=1 // pred_check_branch
      %13 = sbr.rel (0) target = $region9
    $region8: #{tpu_custom_call.1} parent=1 // pred_region
      _
    $region9: #{tpu_custom_call.1} parent=1 // pred_fallthru
      _
    // Predicated region
    $region10: #{tpu_custom_call.1} parent=1 // pred_check
      _
    $region11: #{tpu_custom_call.1} parent=1 // pred_check_branch
      %15 = sbr.rel (0) target = $region13
    $region12: #{tpu_custom_call.1} parent=1 // pred_region
      _
    $region13: #{tpu_custom_call.1} parent=1 // pred_fallthru
      _
    // Predicated region
    $region14: #{tpu_custom_call.1} parent=1 // pred_check
      _
    $region15: #{tpu_custom_call.1} parent=1 // pred_check_branch
      %17 = sbr.rel (0) target = $region17
    $region16: #{tpu_custom_call.1} parent=1 // pred_region
      _
    $region17: #{tpu_custom_call.1} parent=1 // pred_fallthru
      _
    %v18 = vld [vmem:[%s0] sm:$0xff]
    %v19 = vld [vmem:[%s0 + $0x8] sm:$0xf]
    %v20 = vld [vmem:[%s1] sm:$0xff]
    %v21 = vld [vmem:[%s1 + $0x8] sm:$0xff]
    %v22 = vld [vmem:[%s1 + $0x10] sm:$0xff]
    %v23 = vld [vmem:[%s1 + $0x18] sm:$0xff]
    %v24 = vld [vmem:[%s1 + $0x20] sm:$0xff]
    %v25 = vld [vmem:[%s1 + $0x28] sm:$0xff]
    %v26 = vld [vmem:[%s1 + $0x30] sm:$0xff]
    %v27 = vld [vmem:[%s1 + $0x38] sm:$0xff]
    %v28 = vld [vmem:[%s1 + $0x40] sm:$0xff]
    %v29 = vld [vmem:[%s1 + $0x48] sm:$0xff]
    %v30 = vld [vmem:[%s1 + $0x50] sm:$0xff]
    %v31 = vld [vmem:[%s1 + $0x58] sm:$0xff]
    %v32 = vld [vmem:[%s1 + $0x60] sm:$0xff]
    %v33 = vld [vmem:[%s1 + $0x68] sm:$0xff]
    %v34 = vld [vmem:[%s1 + $0x70] sm:$0xff]
    %v35 = vld [vmem:[%s1 + $0x78] sm:$0xff]
    %v36 = vld [vmem:[%s1 + $0x80] sm:$0xff]
    %v37 = vld [vmem:[%s1 + $0x88] sm:$0xff]
    %v38 = vld [vmem:[%s1 + $0x90] sm:$0xff]
    %v39 = vld [vmem:[%s1 + $0x98] sm:$0xff]
    %v40 = vld [vmem:[%s1 + $0xa0] sm:$0xff]
    %v41 = vld [vmem:[%s1 + $0xa8] sm:$0xff]
    %v42 = vld [vmem:[%s1 + $0xb0] sm:$0xff]
    %v43 = vld [vmem:[%s1 + $0xb8] sm:$0xff]
    %v44 = vld [vmem:[%s1 + $0xc0] sm:$0xff]
    %v45 = vld [vmem:[%s1 + $0xc8] sm:$0xff]
    %v46 = vld [vmem:[%s1 + $0xd0] sm:$0xff]
    %v47 = vld [vmem:[%s1 + $0xd8] sm:$0xff]
    %v48 = vld [vmem:[%s1 + $0xe0] sm:$0xff]
    %v49 = vld [vmem:[%s1 + $0xe8] sm:$0xff]
    %v50 = vld [vmem:[%s1 + $0xf0] sm:$0xff]
    %v51 = vld [vmem:[%s1 + $0xf8] sm:$0xff]
    %v52 = vld [vmem:[%s1 + $0x100] sm:$0xff]
    %v53 = vld [vmem:[%s1 + $0x108] sm:$0xff]
    %v54 = vld [vmem:[%s1 + $0x110] sm:$0xff]
    %v55 = vld [vmem:[%s1 + $0x118] sm:$0xff]
    %v56 = vld [vmem:[%s2] sm:$0x1]
    %v58 = vlaneseq
    %v59 = vshrl.u32 %v58, 7
    %v60 = vsub.s32 0, %v59
    %v61 = vrot.slane %v56, %v60
    %v65 = vcombine.high %v18, %v18
    %vm67 = vcmask 261120
    %v68 = vsel %vm67, %v19, 0
    %70 = vmatprep.subr.mxu0 0.0
    %71 = vmatpush1.msra.mxu0 %v35
    %72 = vmatprep.subr.mxu0 0.0
    %73 = vmatpush1.msra.mxu0 %v34
    %74 = vmatprep.subr.mxu0 0.0
    %75 = vmatpush1.msra.mxu0 %v33
    %76 = vmatprep.subr.mxu0 0.0
    %77 = vmatpush1.msra.mxu0 %v32
    %78 = vmatprep.subr.mxu0 0.0
    %79 = vmatpush1.msra.mxu0 %v31
    %80 = vmatprep.subr.mxu0 0.0
    %81 = vmatpush1.msra.mxu0 %v30
    %82 = vmatprep.subr.mxu0 0.0
    %83 = vmatpush1.msra.mxu0 %v29
    %84 = vmatprep.subr.mxu0 0.0
    %85 = vmatpush1.msra.mxu0 %v28
    %86 = vmatprep.subr.mxu0 0.0
    %87 = vmatpush1.msra.mxu0 %v27
    %88 = vmatprep.subr.mxu0 0.0
    %89 = vmatpush1.msra.mxu0 %v26
    %90 = vmatprep.subr.mxu0 0.0
    %91 = vmatpush1.msra.mxu0 %v25
    %92 = vmatprep.subr.mxu0 0.0
    %93 = vmatpush1.msra.mxu0 %v24
    %94 = vmatprep.subr.mxu0 0.0
    %95 = vmatpush1.msra.mxu0 %v23
    %96 = vmatprep.subr.mxu0 0.0
    %97 = vmatpush1.msra.mxu0 %v22
    %98 = vmatprep.subr.mxu0 0.0
    %99 = vmatpush1.msra.mxu0 %v21
    %100 = vmatprep.subr.mxu0 0.0
    %101 = vmatpush1.msra.mxu0 %v20
    %102 = vmatprep.subr.mxu0 0.0
    %103 = vmatpush2.msra.mxu0 %v51
    %104 = vmatprep.subr.mxu0 0.0
    %105 = vmatpush2.msra.mxu0 %v50
    %106 = vmatprep.subr.mxu0 0.0
    %107 = vmatpush2.msra.mxu0 %v49
    %108 = vmatprep.subr.mxu0 0.0
    %109 = vmatpush2.msra.mxu0 %v48
    %110 = vmatprep.subr.mxu0 0.0
    %111 = vmatpush2.msra.mxu0 %v47
    %112 = vmatprep.subr.mxu0 0.0
    %113 = vmatpush2.msra.mxu0 %v46
    %114 = vmatprep.subr.mxu0 0.0
    %115 = vmatpush2.msra.mxu0 %v45
    %116 = vmatprep.subr.mxu0 0.0
    %117 = vmatpush2.msra.mxu0 %v44
    %118 = vmatprep.subr.mxu0 0.0
    %119 = vmatpush2.msra.mxu0 %v43
    %120 = vmatprep.subr.mxu0 0.0
    %121 = vmatpush2.msra.mxu0 %v42
    %122 = vmatprep.subr.mxu0 0.0
    %123 = vmatpush2.msra.mxu0 %v41
    %124 = vmatprep.subr.mxu0 0.0
    %125 = vmatpush2.msra.mxu0 %v40
    %126 = vmatprep.subr.mxu0 0.0
    %127 = vmatpush2.msra.mxu0 %v39
    %128 = vmatprep.subr.mxu0 0.0
    %129 = vmatpush2.msra.mxu0 %v38
    %130 = vmatprep.subr.mxu0 0.0
    %131 = vmatpush2.msra.mxu0 %v37
    %132 = vmatprep.subr.mxu0 0.0
    %133 = vmatpush2.msra.mxu0 %v36
    %134 = vmatprep.mubr.f32.mxu0 %v65
    %135 = vmatmul.mubr.f32.gmra.mxu0 %v18
    %v136 = vpop.f32.mrf.mxu0
    %v137 = vadd.f32 %v61, %v136
    %v138 = vpop.f32.mrf.mxu0
    %139 = vdwg.mxu0
    %140 = vmatprep.subr.mxu0 0.0
    %141 = vmatpush1.msra.mxu0 0.0
    %142 = vmatprep.subr.mxu0 0.0
    %143 = vmatpush1.msra.mxu0 0.0
    %144 = vmatprep.subr.mxu0 0.0
    %145 = vmatpush1.msra.mxu0 0.0
    %146 = vmatprep.subr.mxu0 0.0
    %147 = vmatpush1.msra.mxu0 0.0
    %148 = vmatprep.subr.mxu0 0.0
    %149 = vmatpush1.msra.mxu0 0.0
    %150 = vmatprep.subr.mxu0 0.0
    %151 = vmatpush1.msra.mxu0 0.0
    %152 = vmatprep.subr.mxu0 0.0
    %153 = vmatpush1.msra.mxu0 0.0
    %154 = vmatprep.subr.mxu0 0.0
    %155 = vmatpush1.msra.mxu0 0.0
    %156 = vmatprep.subr.mxu0 0.0
    %157 = vmatpush1.msra.mxu0 0.0
    %158 = vmatprep.subr.mxu0 0.0
    %159 = vmatpush1.msra.mxu0 0.0
    %160 = vmatprep.subr.mxu0 0.0
    %161 = vmatpush1.msra.mxu0 0.0
    %162 = vmatprep.subr.mxu0 0.0
    %163 = vmatpush1.msra.mxu0 0.0
    %164 = vmatprep.subr.mxu0 0.0
    %165 = vmatpush1.msra.mxu0 %v55
    %166 = vmatprep.subr.mxu0 0.0
    %167 = vmatpush1.msra.mxu0 %v54
    %168 = vmatprep.subr.mxu0 0.0
    %169 = vmatpush1.msra.mxu0 %v53
    %170 = vmatprep.subr.mxu0 0.0
    %171 = vmatpush1.msra.mxu0 %v52
    %172 = vmatprep.subr.mxu0 0.0
    %173 = vmatpush2.msra.mxu0 0.0
    %174 = vmatprep.subr.mxu0 0.0
    %175 = vmatpush2.msra.mxu0 0.0
    %176 = vmatprep.subr.mxu0 0.0
    %177 = vmatpush2.msra.mxu0 0.0
    %178 = vmatprep.subr.mxu0 0.0
    %179 = vmatpush2.msra.mxu0 0.0
    %180 = vmatprep.subr.mxu0 0.0
    %181 = vmatpush2.msra.mxu0 0.0
    %182 = vmatprep.subr.mxu0 0.0
    %183 = vmatpush2.msra.mxu0 0.0
    %184 = vmatprep.subr.mxu0 0.0
    %185 = vmatpush2.msra.mxu0 0.0
    %186 = vmatprep.subr.mxu0 0.0
    %187 = vmatpush2.msra.mxu0 0.0
    %188 = vmatprep.subr.mxu0 0.0
    %189 = vmatpush2.msra.mxu0 0.0
    %190 = vmatprep.subr.mxu0 0.0
    %191 = vmatpush2.msra.mxu0 0.0
    %192 = vmatprep.subr.mxu0 0.0
    %193 = vmatpush2.msra.mxu0 0.0
    %194 = vmatprep.subr.mxu0 0.0
    %195 = vmatpush2.msra.mxu0 0.0
    %196 = vmatprep.subr.mxu0 0.0
    %197 = vmatpush2.msra.mxu0 0.0
    %198 = vmatprep.subr.mxu0 0.0
    %199 = vmatpush2.msra.mxu0 0.0
    %200 = vmatprep.subr.mxu0 0.0
    %201 = vmatpush2.msra.mxu0 0.0
    %202 = vmatprep.subr.mxu0 0.0
    %203 = vmatpush2.msra.mxu0 0.0
    %204 = vmatprep.mubr.f32.mxu0 0.0
    %205 = vmatmul.mubr.f32.gmra.mxu0 %v68
    %v206 = vpop.f32.mrf.mxu0
    %v207 = vadd.f32 %v137, %v206
    %v208 = vpop.f32.mrf.mxu0
    %209 = vdwg.mxu0
    %v210 = vxor.u32 %v207, 2147483648
    %v211 = vmul.f32 %v210, 1.442695
    %v212 = vpow.pop %v211
    %v213 = vadd.f32 %v212, 1.0
    %v214 = vrcp.pop %v213
    %v215 = vmul.f32 1.0, %v214
    %v216 = vld [vmem:[%s3] sm:$0xf]
    %vm217 = vcmp.lt.f32.partialorder %v216, %v215
    %v218 = vsel %vm217, 1, 0
    %v219 = vcvt.s32.f32 %v218
    %221 = vrot.lane.b32.xlu0 %v219, 16
    %v222 = vpop.permute.xlu0 %221
    %vm224 = vcmask 130048
    %v225 = vsel %vm224, %v215, %v222
    %vm226 = vcmask 257024
    %227 = vst.msk [vmem:[#allocation2] sm:$0xf] %vm226, %v225
    // Predicated region
    $region18: #{tpu_custom_call.1} parent=1 // pred_check
      _
    $region19: #{tpu_custom_call.1} parent=1 // pred_check_branch
      %229 = sbr.rel (0) target = $region21
    $region20: #{tpu_custom_call.1} parent=1 // pred_region
      %s231 = ssub.s32 64, 64
      %232 = vsyncadd [#allocation3], %s231
      %s234 = sshll.u32 [#allocation2], 4
      %s235 = int_to_ptr.vmem [resolvable:$true] %s234
      %237 = dma.vmem_to_hbm [thread:$0]  %s235, 64, %s4, [#allocation3]
    $region21: #{tpu_custom_call.1} parent=1 // pred_fallthru
      _
    // Predicated region
    $region22: #{tpu_custom_call.1} parent=1 // pred_check
      _
    $region23: #{tpu_custom_call.1} parent=1 // pred_check_branch
      %239 = sbr.rel (0) target = $region25
    $region24: #{tpu_custom_call.1} parent=1 // pred_region
      %240 = dma.done [#allocation3], 64
    $region25: #{tpu_custom_call.1} parent=1 // pred_fallthru
      _
    %241 = vsyncpa [#allocation3], 1

</llo_original>
